<compile_context>
chip_gen: v5e
topology: v5e:2x2
jax: 0.10.0
libtpu: 0.0.40
codegen_flags: <defaults>
</compile_context>

<pallas_src>
import jax
import jax.numpy as jnp
from jax.experimental import pallas as pl
from jax.experimental.pallas import tpu as pltpu


def _round_up(n, m):
    return ((n + m - 1) // m) * m


def _mlp_kernel(x_ref, w1_ref, b1_ref, w2_ref, b2_ref, o_ref):
    """yT = W2ᵀ @ relu(W1ᵀ @ xT + b1) + b2 for one (2, TB) feature-major batch tile."""
    # Layer 1 on the MXU: (128, 2) @ (2, TB) -> (128, TB).  The K=2 contraction is
    # mostly-zero MXU filler, but the MXU is otherwise idle here, and this keeps the
    # VPU work down to bias + ReLU (the saturating slot after the layout fixes).
    h = jnp.dot(w1_ref[...], x_ref[...],
                preferred_element_type=jnp.float32,
                precision=jax.lax.Precision.HIGHEST)
    h = jnp.maximum(h + b1_ref[...], 0.0)                 # bias + ReLU on the VPU
    # Layer 2 on the MXU: (4, 128) @ (128, TB) -> (4, TB).  Lane-dense output tile.
    y = jnp.dot(w2_ref[...], h,
                preferred_element_type=jnp.float32,
                precision=jax.lax.Precision.HIGHEST)
    o_ref[...] = (y + b2_ref[...]).astype(o_ref.dtype)


def nn_forward(x, w1, b1, w2, b2, *, block_b=8192):
    """x: (B, 2) f32; w1: (2, 100); b1: (1, 100) or (100,); w2: (100, 4); b2: (1, 4) or (4,).

    Returns (B, 4), matching relu(x @ w1 + b1) @ w2 + b2.
    block_b: batch tile (lanes) per grid step; sweep ~8192-16384 on v7x,
    up to ~16384-32768 on v5e/v6e (VMEM cost is ~0.6 KB per batch row).
    """
    B, in_dim = x.shape
    H = w1.shape[1]            # 100
    out_dim = w2.shape[1]      # 4
    H_PAD = 128                # lane/sublane-align the hidden dim
    assert H <= H_PAD

    # Feature-major weights; hidden dim zero-padded 100 -> 128 (exact: padded rows of
    # h are relu(0 + 0) = 0 and meet zero columns of W2ᵀ in the second matmul).
    w1t = jnp.zeros((H_PAD, in_dim), jnp.float32).at[:H, :].set(w1.T.astype(jnp.float32))
    b1t = jnp.zeros((H_PAD, 1), jnp.float32).at[:H, :].set(
        b1.astype(jnp.float32).reshape(H, 1))
    w2t = jnp.zeros((out_dim, H_PAD), jnp.float32).at[:, :H].set(w2.T.astype(jnp.float32))
    b2t = b2.astype(jnp.float32).reshape(out_dim, 1)

    # Feature-major activations: batch sits on lanes.
    xt = x.astype(jnp.float32).T                                   # (in_dim, B)

    # Pad batch (lane dim) only up to a multiple of 128 (<= 127 rows); fuses with the
    # transpose above.  Ragged final tiles are handled as Pallas partial blocks.
    b_pad = _round_up(max(B, 128), 128)
    if b_pad != B:
        xt = jnp.pad(xt, ((0, 0), (0, b_pad - B)))

    # Batch tile: multiple of 128 lanes, capped at block_b.  Keep >= 2 grid steps when
    # possible so dimension_semantics=("parallel",) can shard over v7x's 2 TensorCores.
    tb = min(_round_up(block_b, 128), b_pad)
    if b_pad > 128 and tb >= b_pad:
        tb = _round_up(b_pad // 2, 128)
    grid = (pl.cdiv(b_pad, tb),)

    flops = 2 * b_pad * (in_dim * H_PAD + H_PAD * out_dim)
    bytes_accessed = (
        b_pad * (in_dim + out_dim) * 4
        + (w1t.size + b1t.size + w2t.size + b2t.size) * 4
    )

    out_t = pl.pallas_call(
        _mlp_kernel,
        out_shape=jax.ShapeDtypeStruct((out_dim, b_pad), jnp.float32),
        grid=grid,
        in_specs=[
            pl.BlockSpec((in_dim, tb), lambda i: (0, i)),     # xT: tiled over batch lanes
            pl.BlockSpec((H_PAD, in_dim), lambda i: (0, 0)),  # W1ᵀ: VMEM-resident
            pl.BlockSpec((H_PAD, 1), lambda i: (0, 0)),       # b1:  resident
            pl.BlockSpec((out_dim, H_PAD), lambda i: (0, 0)), # W2ᵀ: resident
            pl.BlockSpec((out_dim, 1), lambda i: (0, 0)),     # b2:  resident
        ],
        out_specs=pl.BlockSpec((out_dim, tb), lambda i: (0, i)),   # lane-dense output
        compiler_params=pltpu.CompilerParams(
            dimension_semantics=("parallel",),        # 2-TC batch sharding on v7x
            vmem_limit_bytes=32 * 1024 * 1024,        # safe on v5e/v6e (128 MiB) and v7x (64 MiB)
        ),
        cost_estimate=pl.CostEstimate(
            flops=flops, transcendentals=0, bytes_accessed=bytes_accessed
        ),
    )(xt, w1t, b1t, w2t, b2t)

    # Back to the module's (B, 4) convention; padded batch lanes are discarded.
    return out_t[:, :B].T


def init_params(key):
    """Deterministic init matching PyTorch nn.Linear default (uniform +/- 1/sqrt(fan_in))."""
    k1, k2, k3, k4 = jax.random.split(key, 4)
    in1, h, out = 2, 100, 4
    bound1 = 1.0 / jnp.sqrt(jnp.float32(in1))
    bound2 = 1.0 / jnp.sqrt(jnp.float32(h))
    # stored as (in_features, out_features) == PyTorch weight.T
    w1 = jax.random.uniform(k1, (in1, h), jnp.float32, -bound1, bound1)
    b1 = jax.random.uniform(k2, (1, h), jnp.float32, -bound1, bound1)
    w2 = jax.random.uniform(k3, (h, out), jnp.float32, -bound2, bound2)
    b2 = jax.random.uniform(k4, (1, out), jnp.float32, -bound2, bound2)
    return w1, b1, w2, b2


def reference_forward(x, w1, b1, w2, b2):
    h = jnp.maximum(
        jnp.dot(x, w1, precision=jax.lax.Precision.HIGHEST) + b1, 0.0)
    return jnp.dot(h, w2, precision=jax.lax.Precision.HIGHEST) + b2


if __name__ == "__main__":
    key = jax.random.PRNGKey(0)
    kx, kx2, kp = jax.random.split(key, 3)
    w1, b1, w2, b2 = init_params(kp)

    fwd = jax.jit(nn_forward)

    # Small demo batch (module expects 2 input features).
    batch = 8
    x = jax.random.normal(kx, (batch, 2), jnp.float32)
    y = jax.block_until_ready(fwd(x, w1, b1, w2, b2))
    y_ref = reference_forward(x, w1, b1, w2, b2)
    assert y.shape == (batch, 4)
    assert jnp.allclose(y, y_ref, atol=1e-5, rtol=1e-5)

    # Larger, non-tile-divisible batch: exercises the multi-step grid (>=2 steps,
    # v7x 2-TC path) and the partial final block / lane-padding path.
    batch2 = 2500
    x2 = jax.random.normal(kx2, (batch2, 2), jnp.float32)
    y2 = jax.block_until_ready(fwd(x2, w1, b1, w2, b2))
    y2_ref = reference_forward(x2, w1, b1, w2, b2)
    assert y2.shape == (batch2, 4)
    assert jnp.allclose(y2, y2_ref, atol=1e-5, rtol=1e-5)

    print("KERNEL_OK")
</pallas_src>

<mosaic_0001>
module attributes {stable_mosaic.version = 11 : i64} {
  func.func @_mlp_kernel(%arg0: i32, %arg1: memref<2x128xf32, #tpu.memory_space<vmem>>, %arg2: memref<128x2xf32, #tpu.memory_space<vmem>>, %arg3: memref<128x1xf32, #tpu.memory_space<vmem>>, %arg4: memref<4x128xf32, #tpu.memory_space<vmem>>, %arg5: memref<4x1xf32, #tpu.memory_space<vmem>>, %arg6: memref<4x128xf32, #tpu.memory_space<vmem>>) attributes {dimension_semantics = [#tpu.dimension_semantics<parallel>], iteration_bounds = array<i64: 1>, scalar_prefetch = 0 : i64, scratch_operands = 0 : i64, tpu.core_type = #tpu.core_type<tc>, window_params = [{transform_indices = @transform_0, window_bounds = array<i64: 2, 128>}, {pipeline_mode = #tpu.pipeline_mode<synchronous>, transform_indices = @transform_1, window_bounds = array<i64: 128, 2>}, {pipeline_mode = #tpu.pipeline_mode<synchronous>, transform_indices = @transform_2, window_bounds = array<i64: 128, 1>}, {pipeline_mode = #tpu.pipeline_mode<synchronous>, transform_indices = @transform_3, window_bounds = array<i64: 4, 128>}, {pipeline_mode = #tpu.pipeline_mode<synchronous>, transform_indices = @transform_4, window_bounds = array<i64: 4, 1>}, {transform_indices = @transform_5, window_bounds = array<i64: 4, 128>}]} {
    %c0 = arith.constant 0 : index
    %c0_0 = arith.constant 0 : index
    %0 = vector.load %arg2[%c0, %c0_0] : memref<128x2xf32, #tpu.memory_space<vmem>>, vector<128x2xf32>
    %c0_1 = arith.constant 0 : index
    %c0_2 = arith.constant 0 : index
    %1 = vector.load %arg1[%c0_1, %c0_2] : memref<2x128xf32, #tpu.memory_space<vmem>>, vector<2x128xf32>
    %cst = arith.constant dense<0.000000e+00> : vector<128x128xf32>
    %2 = tpu.matmul %0, %1, %cst {dimension_numbers = #tpu.dot_dimension_numbers<[1], [0], [0], [1], [0, 0, 1, 1], [], []>, precision = #tpu.contract_precision<fp32>} : vector<128x2xf32>, vector<2x128xf32>, vector<128x128xf32> -> vector<128x128xf32>
    %c0_3 = arith.constant 0 : index
    %c0_4 = arith.constant 0 : index
    %3 = vector.load %arg3[%c0_3, %c0_4] : memref<128x1xf32, #tpu.memory_space<vmem>>, vector<128x1xf32>
    %4 = vector.broadcast %3 : vector<128x1xf32> to vector<128x128xf32>
    %5 = arith.addf %2, %4 : vector<128x128xf32>
    %cst_5 = arith.constant 0.000000e+00 : f32
    %6 = vector.broadcast %cst_5 : f32 to vector<128x128xf32>
    %7 = arith.maximumf %5, %6 : vector<128x128xf32>
    %c0_6 = arith.constant 0 : index
    %c0_7 = arith.constant 0 : index
    %8 = vector.load %arg4[%c0_6, %c0_7] : memref<4x128xf32, #tpu.memory_space<vmem>>, vector<4x128xf32>
    %cst_8 = arith.constant dense<0.000000e+00> : vector<4x128xf32>
    %9 = tpu.matmul %8, %7, %cst_8 {dimension_numbers = #tpu.dot_dimension_numbers<[1], [0], [0], [1], [0, 0, 1, 1], [], []>, precision = #tpu.contract_precision<fp32>} : vector<4x128xf32>, vector<128x128xf32>, vector<4x128xf32> -> vector<4x128xf32>
    %c0_9 = arith.constant 0 : index
    %c0_10 = arith.constant 0 : index
    %10 = vector.load %arg5[%c0_9, %c0_10] : memref<4x1xf32, #tpu.memory_space<vmem>>, vector<4x1xf32>
    %11 = vector.broadcast %10 : vector<4x1xf32> to vector<4x128xf32>
    %12 = arith.addf %9, %11 : vector<4x128xf32>
    %c0_11 = arith.constant 0 : index
    %c0_12 = arith.constant 0 : index
    %13 = vector.load %arg6[%c0_11, %c0_12] : memref<4x128xf32, #tpu.memory_space<vmem>>, vector<4x128xf32>
    tpu.vector_store %arg6[%c0_11, %c0_12], %12 {strides = array<i32>} : memref<4x128xf32, #tpu.memory_space<vmem>>, vector<4x128xf32>,
    return
  }
  func.func @transform_0(%arg0: i32) -> (i32, i32) {
    %c0_i32 = arith.constant 0 : i32
    %c0_i32_0 = arith.constant 0 : i32
    return %c0_i32, %arg0 : i32, i32
  }
  func.func @transform_1(%arg0: i32) -> (i32, i32) {
    %c0_i32 = arith.constant 0 : i32
    %c0_i32_0 = arith.constant 0 : i32
    %c0_i32_1 = arith.constant 0 : i32
    return %c0_i32, %c0_i32_0 : i32, i32
  }
  func.func @transform_2(%arg0: i32) -> (i32, i32) {
    %c0_i32 = arith.constant 0 : i32
    %c0_i32_0 = arith.constant 0 : i32
    %c0_i32_1 = arith.constant 0 : i32
    return %c0_i32, %c0_i32_0 : i32, i32
  }
  func.func @transform_3(%arg0: i32) -> (i32, i32) {
    %c0_i32 = arith.constant 0 : i32
    %c0_i32_0 = arith.constant 0 : i32
    %c0_i32_1 = arith.constant 0 : i32
    return %c0_i32, %c0_i32_0 : i32, i32
  }
  func.func @transform_4(%arg0: i32) -> (i32, i32) {
    %c0_i32 = arith.constant 0 : i32
    %c0_i32_0 = arith.constant 0 : i32
    %c0_i32_1 = arith.constant 0 : i32
    return %c0_i32, %c0_i32_0 : i32, i32
  }
  func.func @transform_5(%arg0: i32) -> (i32, i32) {
    %c0_i32 = arith.constant 0 : i32
    %c0_i32_0 = arith.constant 0 : i32
    return %c0_i32, %arg0 : i32, i32
  }
}

</mosaic_0001>

<llo_original>
// kernel: nn_forward.1
$region0: #{nn_forward.1}
  #allocation0 [shape = 'u32[]', space=smem, size = 0x4, offset = 0x4, fixed_abs, tag = 'smem constant byte address 0x4 - core index']
  #allocation1 [shape = 'u32[72,128]{1,0:T(1,128)}', space=vmem, size = 0x9000, scoped, tag = 'internal scratch']
  %s0 = inlined_call_operand.vmem [shape: f32[2,128], index: 0, kind: input, shape index: {}]
  %s1 = inlined_call_operand.vmem [shape: f32[128,2], index: 1, kind: input, shape index: {}]
  %s2 = inlined_call_operand.vmem [shape: f32[128,1], index: 2, kind: input, shape index: {}]
  %s3 = inlined_call_operand.vmem [shape: f32[4,128], index: 3, kind: input, shape index: {}]
  %s4 = inlined_call_operand.vmem [shape: f32[4,1], index: 4, kind: input, shape index: {}]
  %s5 = inlined_call_operand.vmem [shape: f32[4,128], index: 5, kind: output, shape index: {}]
  %s6 = sld [smem:[#allocation0]]
  $region30: #{nn_forward.1} parent=0
    _
  %s8 = ssub.s32 1, %s6
  %s9 = scalar_select 0, %s8, %s6
  // Predicated region
  $region2: #{nn_forward.1} parent=0 // pred_check
    _
  $region3: #{nn_forward.1} parent=0 // pred_check_branch
    %11 = sbr.rel (0) target = $region5
  $region4: #{nn_forward.1} parent=0 // pred_region
    _
  $region5: #{nn_forward.1} parent=0 // pred_fallthru
    _
  // Predicated region
  $region6: #{nn_forward.1} parent=0 // pred_check
    _
  $region7: #{nn_forward.1} parent=0 // pred_check_branch
    %13 = sbr.rel (0) target = $region9
  $region8: #{nn_forward.1} parent=0 // pred_region
    _
  $region9: #{nn_forward.1} parent=0 // pred_fallthru
    _
  // Predicated region
  $region10: #{nn_forward.1} parent=0 // pred_check
    _
  $region11: #{nn_forward.1} parent=0 // pred_check_branch
    %15 = sbr.rel (0) target = $region13
  $region12: #{nn_forward.1} parent=0 // pred_region
    _
  $region13: #{nn_forward.1} parent=0 // pred_fallthru
    _
  // Predicated region
  $region14: #{nn_forward.1} parent=0 // pred_check
    _
  $region15: #{nn_forward.1} parent=0 // pred_check_branch
    %17 = sbr.rel (0) target = $region17
  $region16: #{nn_forward.1} parent=0 // pred_region
    _
  $region17: #{nn_forward.1} parent=0 // pred_fallthru
    _
  // Predicated region
  $region18: #{nn_forward.1} parent=0 // pred_check
    _
  $region19: #{nn_forward.1} parent=0 // pred_check_branch
    %19 = sbr.rel (0) target = $region21
  $region20: #{nn_forward.1} parent=0 // pred_region
    _
  $region21: #{nn_forward.1} parent=0 // pred_fallthru
    _
  %v20 = vld [vmem:[%s1] sm:$0xff]
  %v21 = vld [vmem:[%s1 + $0x8] sm:$0xff]
  %v22 = vld [vmem:[%s1 + $0x10] sm:$0xff]
  %v23 = vld [vmem:[%s1 + $0x18] sm:$0xff]
  %v24 = vld [vmem:[%s1 + $0x20] sm:$0xff]
  %v25 = vld [vmem:[%s1 + $0x28] sm:$0xff]
  %v26 = vld [vmem:[%s1 + $0x30] sm:$0xff]
  %v27 = vld [vmem:[%s1 + $0x38] sm:$0xff]
  %v28 = vld [vmem:[%s1 + $0x40] sm:$0xff]
  %v29 = vld [vmem:[%s1 + $0x48] sm:$0xff]
  %v30 = vld [vmem:[%s1 + $0x50] sm:$0xff]
  %v31 = vld [vmem:[%s1 + $0x58] sm:$0xff]
  %v32 = vld [vmem:[%s1 + $0x60] sm:$0xff]
  %v33 = vld [vmem:[%s1 + $0x68] sm:$0xff]
  %v34 = vld [vmem:[%s1 + $0x70] sm:$0xff]
  %v35 = vld [vmem:[%s1 + $0x78] sm:$0xff]
  %v36 = vld [vmem:[%s0] sm:$0x3]
  %v37 = vld [vmem:[%s2] sm:$0xff]
  %v38 = vld [vmem:[%s2 + $0x8] sm:$0xff]
  %v39 = vld [vmem:[%s2 + $0x10] sm:$0xff]
  %v40 = vld [vmem:[%s2 + $0x18] sm:$0xff]
  %v41 = vld [vmem:[%s2 + $0x20] sm:$0xff]
  %v42 = vld [vmem:[%s2 + $0x28] sm:$0xff]
  %v43 = vld [vmem:[%s2 + $0x30] sm:$0xff]
  %v44 = vld [vmem:[%s2 + $0x38] sm:$0xff]
  %v45 = vld [vmem:[%s2 + $0x40] sm:$0xff]
  %v46 = vld [vmem:[%s2 + $0x48] sm:$0xff]
  %v47 = vld [vmem:[%s2 + $0x50] sm:$0xff]
  %v48 = vld [vmem:[%s2 + $0x58] sm:$0xff]
  %v49 = vld [vmem:[%s2 + $0x60] sm:$0xff]
  %v50 = vld [vmem:[%s2 + $0x68] sm:$0xff]
  %v51 = vld [vmem:[%s2 + $0x70] sm:$0xff]
  %v52 = vld [vmem:[%s2 + $0x78] sm:$0xff]
  %54 = vset.pattern.permute.xlu0 0
  %55 = vperm.xlu0 %54, %v37
  %v56 = vpop.permute.xlu0 %55
  %59 = vset.pattern.permute.xlu0 0
  %60 = vperm.xlu0 %59, %v38
  %v61 = vpop.permute.xlu0 %60
  %64 = vset.pattern.permute.xlu0 0
  %65 = vperm.xlu0 %64, %v39
  %v66 = vpop.permute.xlu0 %65
  %69 = vset.pattern.permute.xlu0 0
  %70 = vperm.xlu0 %69, %v40
  %v71 = vpop.permute.xlu0 %70
  %74 = vset.pattern.permute.xlu0 0
  %75 = vperm.xlu0 %74, %v41
  %v76 = vpop.permute.xlu0 %75
  %79 = vset.pattern.permute.xlu0 0
  %80 = vperm.xlu0 %79, %v42
  %v81 = vpop.permute.xlu0 %80
  %84 = vset.pattern.permute.xlu0 0
  %85 = vperm.xlu0 %84, %v43
  %v86 = vpop.permute.xlu0 %85
  %89 = vset.pattern.permute.xlu0 0
  %90 = vperm.xlu0 %89, %v44
  %v91 = vpop.permute.xlu0 %90
  %94 = vset.pattern.permute.xlu0 0
  %95 = vperm.xlu0 %94, %v45
  %v96 = vpop.permute.xlu0 %95
  %99 = vset.pattern.permute.xlu0 0
  %100 = vperm.xlu0 %99, %v46
  %v101 = vpop.permute.xlu0 %100
  %104 = vset.pattern.permute.xlu0 0
  %105 = vperm.xlu0 %104, %v47
  %v106 = vpop.permute.xlu0 %105
  %109 = vset.pattern.permute.xlu0 0
  %110 = vperm.xlu0 %109, %v48
  %v111 = vpop.permute.xlu0 %110
  %114 = vset.pattern.permute.xlu0 0
  %115 = vperm.xlu0 %114, %v49
  %v116 = vpop.permute.xlu0 %115
  %119 = vset.pattern.permute.xlu0 0
  %120 = vperm.xlu0 %119, %v50
  %v121 = vpop.permute.xlu0 %120
  %124 = vset.pattern.permute.xlu0 0
  %125 = vperm.xlu0 %124, %v51
  %v126 = vpop.permute.xlu0 %125
  %129 = vset.pattern.permute.xlu0 0
  %130 = vperm.xlu0 %129, %v52
  %v131 = vpop.permute.xlu0 %130
  %vm133 = vcmask 15360
  %v135 = vsel %vm133, %v20, 0
  %v138 = vsel %vm133, %v21, 0
  %v141 = vsel %vm133, %v22, 0
  %v144 = vsel %vm133, %v23, 0
  %v147 = vsel %vm133, %v24, 0
  %v150 = vsel %vm133, %v25, 0
  %v153 = vsel %vm133, %v26, 0
  %v156 = vsel %vm133, %v27, 0
  %v159 = vsel %vm133, %v28, 0
  %v162 = vsel %vm133, %v29, 0
  %v165 = vsel %vm133, %v30, 0
  %v168 = vsel %vm133, %v31, 0
  %v171 = vsel %vm133, %v32, 0
  %v174 = vsel %vm133, %v33, 0
  %v177 = vsel %vm133, %v34, 0
  %v180 = vsel %vm133, %v35, 0
  %vm182 = vcmask 1041408
  %v184 = vsel %vm182, %v36, 0
  %186 = vmatpush.msra.mxu0 0.0
  %187 = vmatpush.msra.mxu0 0.0
  %188 = vmatpush.msra.mxu0 0.0
  %189 = vmatpush.msra.mxu0 0.0
  %190 = vmatpush.msra.mxu0 0.0
  %191 = vmatpush.msra.mxu0 0.0
  %192 = vmatpush.msra.mxu0 0.0
  %193 = vmatpush.msra.mxu0 0.0
  %194 = vmatpush.msra.mxu0 0.0
  %195 = vmatpush.msra.mxu0 0.0
  %196 = vmatpush.msra.mxu0 0.0
  %197 = vmatpush.msra.mxu0 0.0
  %198 = vmatpush.msra.mxu0 0.0
  %199 = vmatpush.msra.mxu0 0.0
  %200 = vmatpush.msra.mxu0 0.0
  %v201 = vand.u32 %v184, 4294901760
  %202 = vmatpush.msra.mxu0 %v201
  %v203 = vand.u32 %v135, 4294901760
  %v204 = vsub.f32 %v135, %v203
  %v205 = vand.u32 %v204, 4294901760
  %v206 = vsub.f32 %v204, %v205
  %v207 = vand.u32 %v206, 4294901760
  %208 = vmatmul.f32.gmra.mxu0 %v207
  %v209 = vpop.f32.mrf.mxu0
  %v210 = vadd.f32 %v56, %v209
  %v211 = vand.u32 %v138, 4294901760
  %v212 = vsub.f32 %v138, %v211
  %v213 = vand.u32 %v212, 4294901760
  %v214 = vsub.f32 %v212, %v213
  %v215 = vand.u32 %v214, 4294901760
  %216 = vmatmul.f32.gmra.mxu0 %v215
  %v217 = vpop.f32.mrf.mxu0
  %v218 = vadd.f32 %v61, %v217
  %v219 = vand.u32 %v141, 4294901760
  %v220 = vsub.f32 %v141, %v219
  %v221 = vand.u32 %v220, 4294901760
  %v222 = vsub.f32 %v220, %v221
  %v223 = vand.u32 %v222, 4294901760
  %224 = vmatmul.f32.gmra.mxu0 %v223
  %v225 = vpop.f32.mrf.mxu0
  %v226 = vadd.f32 %v66, %v225
  %v227 = vand.u32 %v144, 4294901760
  %v228 = vsub.f32 %v144, %v227
  %v229 = vand.u32 %v228, 4294901760
  %v230 = vsub.f32 %v228, %v229
  %v231 = vand.u32 %v230, 4294901760
  %232 = vmatmul.f32.gmra.mxu0 %v231
  %v233 = vpop.f32.mrf.mxu0
  %v234 = vadd.f32 %v71, %v233
  %v235 = vand.u32 %v147, 4294901760
  %v236 = vsub.f32 %v147, %v235
  %v237 = vand.u32 %v236, 4294901760
  %v238 = vsub.f32 %v236, %v237
  %v239 = vand.u32 %v238, 4294901760
  %240 = vmatmul.f32.gmra.mxu0 %v239
  %v241 = vpop.f32.mrf.mxu0
  %v242 = vadd.f32 %v76, %v241
  %v243 = vand.u32 %v150, 4294901760
  %v244 = vsub.f32 %v150, %v243
  %v245 = vand.u32 %v244, 4294901760
  %v246 = vsub.f32 %v244, %v245
  %v247 = vand.u32 %v246, 4294901760
  %248 = vmatmul.f32.gmra.mxu0 %v247
  %v249 = vpop.f32.mrf.mxu0
  %v250 = vadd.f32 %v81, %v249
  %v251 = vand.u32 %v153, 4294901760
  %v252 = vsub.f32 %v153, %v251
  %v253 = vand.u32 %v252, 4294901760
  %v254 = vsub.f32 %v252, %v253
  %v255 = vand.u32 %v254, 4294901760
  %256 = vmatmul.f32.gmra.mxu0 %v255
  %v257 = vpop.f32.mrf.mxu0
  %v258 = vadd.f32 %v86, %v257
  %v259 = vand.u32 %v156, 4294901760
  %v260 = vsub.f32 %v156, %v259
  %v261 = vand.u32 %v260, 4294901760
  %v262 = vsub.f32 %v260, %v261
  %v263 = vand.u32 %v262, 4294901760
  %264 = vmatmul.f32.gmra.mxu0 %v263
  %v265 = vpop.f32.mrf.mxu0
  %v266 = vadd.f32 %v91, %v265
  %v267 = vand.u32 %v159, 4294901760
  %v268 = vsub.f32 %v159, %v267
  %v269 = vand.u32 %v268, 4294901760
  %v270 = vsub.f32 %v268, %v269
  %v271 = vand.u32 %v270, 4294901760
  %272 = vmatmul.f32.gmra.mxu0 %v271
  %v273 = vpop.f32.mrf.mxu0
  %v274 = vadd.f32 %v96, %v273
  %v275 = vand.u32 %v162, 4294901760
  %v276 = vsub.f32 %v162, %v275
  %v277 = vand.u32 %v276, 4294901760
  %v278 = vsub.f32 %v276, %v277
  %v279 = vand.u32 %v278, 4294901760
  %280 = vmatmul.f32.gmra.mxu0 %v279
  %v281 = vpop.f32.mrf.mxu0
  %v282 = vadd.f32 %v101, %v281
  %v283 = vand.u32 %v165, 4294901760
  %v284 = vsub.f32 %v165, %v283
  %v285 = vand.u32 %v284, 4294901760
  %v286 = vsub.f32 %v284, %v285
  %v287 = vand.u32 %v286, 4294901760
  %288 = vmatmul.f32.gmra.mxu0 %v287
  %v289 = vpop.f32.mrf.mxu0
  %v290 = vadd.f32 %v106, %v289
  %v291 = vand.u32 %v168, 4294901760
  %v292 = vsub.f32 %v168, %v291
  %v293 = vand.u32 %v292, 4294901760
  %v294 = vsub.f32 %v292, %v293
  %v295 = vand.u32 %v294, 4294901760
  %296 = vmatmul.f32.gmra.mxu0 %v295
  %v297 = vpop.f32.mrf.mxu0
  %v298 = vadd.f32 %v111, %v297
  %v299 = vand.u32 %v171, 4294901760
  %v300 = vsub.f32 %v171, %v299
  %v301 = vand.u32 %v300, 4294901760
  %v302 = vsub.f32 %v300, %v301
  %v303 = vand.u32 %v302, 4294901760
  %304 = vmatmul.f32.gmra.mxu0 %v303
  %v305 = vpop.f32.mrf.mxu0
  %v306 = vadd.f32 %v116, %v305
  %v307 = vand.u32 %v174, 4294901760
  %v308 = vsub.f32 %v174, %v307
  %v309 = vand.u32 %v308, 4294901760
  %v310 = vsub.f32 %v308, %v309
  %v311 = vand.u32 %v310, 4294901760
  %312 = vmatmul.f32.gmra.mxu0 %v311
  %v313 = vpop.f32.mrf.mxu0
  %v314 = vadd.f32 %v121, %v313
  %v315 = vand.u32 %v177, 4294901760
  %v316 = vsub.f32 %v177, %v315
  %v317 = vand.u32 %v316, 4294901760
  %v318 = vsub.f32 %v316, %v317
  %v319 = vand.u32 %v318, 4294901760
  %320 = vmatmul.f32.gmra.mxu0 %v319
  %v321 = vpop.f32.mrf.mxu0
  %v322 = vadd.f32 %v126, %v321
  %v323 = vand.u32 %v180, 4294901760
  %v324 = vsub.f32 %v180, %v323
  %v325 = vand.u32 %v324, 4294901760
  %v326 = vsub.f32 %v324, %v325
  %v327 = vand.u32 %v326, 4294901760
  %328 = vmatmul.f32.gmra.mxu0 %v327
  %v329 = vpop.f32.mrf.mxu0
  %v330 = vadd.f32 %v131, %v329
  %331 = vdwg.mxu0
  %332 = vmatpush.msra.mxu0 0.0
  %333 = vmatpush.msra.mxu0 0.0
  %334 = vmatpush.msra.mxu0 0.0
  %335 = vmatpush.msra.mxu0 0.0
  %336 = vmatpush.msra.mxu0 0.0
  %337 = vmatpush.msra.mxu0 0.0
  %338 = vmatpush.msra.mxu0 0.0
  %339 = vmatpush.msra.mxu0 0.0
  %340 = vmatpush.msra.mxu0 0.0
  %341 = vmatpush.msra.mxu0 0.0
  %342 = vmatpush.msra.mxu0 0.0
  %343 = vmatpush.msra.mxu0 0.0
  %344 = vmatpush.msra.mxu0 0.0
  %345 = vmatpush.msra.mxu0 0.0
  %346 = vmatpush.msra.mxu0 0.0
  %v347 = vand.u32 %v184, 4294901760
  %v348 = vsub.f32 %v184, %v347
  %v349 = vand.u32 %v348, 4294901760
  %v350 = vsub.f32 %v348, %v349
  %v351 = vand.u32 %v350, 4294901760
  %352 = vmatpush.msra.mxu0 %v351
  %v353 = vand.u32 %v135, 4294901760
  %354 = vmatmul.f32.gmra.mxu0 %v353
  %v355 = vpop.f32.mrf.mxu0
  %v356 = vadd.f32 %v210, %v355
  %v357 = vand.u32 %v138, 4294901760
  %358 = vmatmul.f32.gmra.mxu0 %v357
  %v359 = vpop.f32.mrf.mxu0
  %v360 = vadd.f32 %v218, %v359
  %v361 = vand.u32 %v141, 4294901760
  %362 = vmatmul.f32.gmra.mxu0 %v361
  %v363 = vpop.f32.mrf.mxu0
  %v364 = vadd.f32 %v226, %v363
  %v365 = vand.u32 %v144, 4294901760
  %366 = vmatmul.f32.gmra.mxu0 %v365
  %v367 = vpop.f32.mrf.mxu0
  %v368 = vadd.f32 %v234, %v367
  %v369 = vand.u32 %v147, 4294901760
  %370 = vmatmul.f32.gmra.mxu0 %v369
  %v371 = vpop.f32.mrf.mxu0
  %v372 = vadd.f32 %v242, %v371
  %v373 = vand.u32 %v150, 4294901760
  %374 = vmatmul.f32.gmra.mxu0 %v373
  %v375 = vpop.f32.mrf.mxu0
  %v376 = vadd.f32 %v250, %v375
  %v377 = vand.u32 %v153, 4294901760
  %378 = vmatmul.f32.gmra.mxu0 %v377
  %v379 = vpop.f32.mrf.mxu0
  %v380 = vadd.f32 %v258, %v379
  %v381 = vand.u32 %v156, 4294901760
  %382 = vmatmul.f32.gmra.mxu0 %v381
  %v383 = vpop.f32.mrf.mxu0
  %v384 = vadd.f32 %v266, %v383
  %v385 = vand.u32 %v159, 4294901760
  %386 = vmatmul.f32.gmra.mxu0 %v385
  %v387 = vpop.f32.mrf.mxu0
  %v388 = vadd.f32 %v274, %v387
  %v389 = vand.u32 %v162, 4294901760
  %390 = vmatmul.f32.gmra.mxu0 %v389
  %v391 = vpop.f32.mrf.mxu0
  %v392 = vadd.f32 %v282, %v391
  %v393 = vand.u32 %v165, 4294901760
  %394 = vmatmul.f32.gmra.mxu0 %v393
  %v395 = vpop.f32.mrf.mxu0
  %v396 = vadd.f32 %v290, %v395
  %v397 = vand.u32 %v168, 4294901760
  %398 = vmatmul.f32.gmra.mxu0 %v397
  %v399 = vpop.f32.mrf.mxu0
  %v400 = vadd.f32 %v298, %v399
  %v401 = vand.u32 %v171, 4294901760
  %402 = vmatmul.f32.gmra.mxu0 %v401
  %v403 = vpop.f32.mrf.mxu0
  %v404 = vadd.f32 %v306, %v403
  %v405 = vand.u32 %v174, 4294901760
  %406 = vmatmul.f32.gmra.mxu0 %v405
  %v407 = vpop.f32.mrf.mxu0
  %v408 = vadd.f32 %v314, %v407
  %v409 = vand.u32 %v177, 4294901760
  %410 = vmatmul.f32.gmra.mxu0 %v409
  %v411 = vpop.f32.mrf.mxu0
  %v412 = vadd.f32 %v322, %v411
  %v413 = vand.u32 %v180, 4294901760
  %414 = vmatmul.f32.gmra.mxu0 %v413
  %v415 = vpop.f32.mrf.mxu0
  %v416 = vadd.f32 %v330, %v415
  %417 = vdwg.mxu0
  %418 = vmatpush.msra.mxu0 0.0
  %419 = vmatpush.msra.mxu0 0.0
  %420 = vmatpush.msra.mxu0 0.0
  %421 = vmatpush.msra.mxu0 0.0
  %422 = vmatpush.msra.mxu0 0.0
  %423 = vmatpush.msra.mxu0 0.0
  %424 = vmatpush.msra.mxu0 0.0
  %425 = vmatpush.msra.mxu0 0.0
  %426 = vmatpush.msra.mxu0 0.0
  %427 = vmatpush.msra.mxu0 0.0
  %428 = vmatpush.msra.mxu0 0.0
  %429 = vmatpush.msra.mxu0 0.0
  %430 = vmatpush.msra.mxu0 0.0
  %431 = vmatpush.msra.mxu0 0.0
  %432 = vmatpush.msra.mxu0 0.0
  %v433 = vand.u32 %v184, 4294901760
  %v434 = vsub.f32 %v184, %v433
  %435 = vmatpush.msra.mxu0 %v434
  %v436 = vand.u32 %v135, 4294901760
  %v437 = vsub.f32 %v135, %v436
  %438 = vmatmul.f32.gmra.mxu0 %v437
  %v439 = vpop.f32.mrf.mxu0
  %v440 = vadd.f32 %v356, %v439
  %v441 = vand.u32 %v138, 4294901760
  %v442 = vsub.f32 %v138, %v441
  %443 = vmatmul.f32.gmra.mxu0 %v442
  %v444 = vpop.f32.mrf.mxu0
  %v445 = vadd.f32 %v360, %v444
  %v446 = vand.u32 %v141, 4294901760
  %v447 = vsub.f32 %v141, %v446
  %448 = vmatmul.f32.gmra.mxu0 %v447
  %v449 = vpop.f32.mrf.mxu0
  %v450 = vadd.f32 %v364, %v449
  %v451 = vand.u32 %v144, 4294901760
  %v452 = vsub.f32 %v144, %v451
  %453 = vmatmul.f32.gmra.mxu0 %v452
  %v454 = vpop.f32.mrf.mxu0
  %v455 = vadd.f32 %v368, %v454
  %v456 = vand.u32 %v147, 4294901760
  %v457 = vsub.f32 %v147, %v456
  %458 = vmatmul.f32.gmra.mxu0 %v457
  %v459 = vpop.f32.mrf.mxu0
  %v460 = vadd.f32 %v372, %v459
  %v461 = vand.u32 %v150, 4294901760
  %v462 = vsub.f32 %v150, %v461
  %463 = vmatmul.f32.gmra.mxu0 %v462
  %v464 = vpop.f32.mrf.mxu0
  %v465 = vadd.f32 %v376, %v464
  %v466 = vand.u32 %v153, 4294901760
  %v467 = vsub.f32 %v153, %v466
  %468 = vmatmul.f32.gmra.mxu0 %v467
  %v469 = vpop.f32.mrf.mxu0
  %v470 = vadd.f32 %v380, %v469
  %v471 = vand.u32 %v156, 4294901760
  %v472 = vsub.f32 %v156, %v471
  %473 = vmatmul.f32.gmra.mxu0 %v472
  %v474 = vpop.f32.mrf.mxu0
  %v475 = vadd.f32 %v384, %v474
  %v476 = vand.u32 %v159, 4294901760
  %v477 = vsub.f32 %v159, %v476
  %478 = vmatmul.f32.gmra.mxu0 %v477
  %v479 = vpop.f32.mrf.mxu0
  %v480 = vadd.f32 %v388, %v479
  %v481 = vand.u32 %v162, 4294901760
  %v482 = vsub.f32 %v162, %v481
  %483 = vmatmul.f32.gmra.mxu0 %v482
  %v484 = vpop.f32.mrf.mxu0
  %v485 = vadd.f32 %v392, %v484
  %v486 = vand.u32 %v165, 4294901760
  %v487 = vsub.f32 %v165, %v486
  %488 = vmatmul.f32.gmra.mxu0 %v487
  %v489 = vpop.f32.mrf.mxu0
  %v490 = vadd.f32 %v396, %v489
  %v491 = vand.u32 %v168, 4294901760
  %v492 = vsub.f32 %v168, %v491
  %493 = vmatmul.f32.gmra.mxu0 %v492
  %v494 = vpop.f32.mrf.mxu0
  %v495 = vadd.f32 %v400, %v494
  %v496 = vand.u32 %v171, 4294901760
  %v497 = vsub.f32 %v171, %v496
  %498 = vmatmul.f32.gmra.mxu0 %v497
  %v499 = vpop.f32.mrf.mxu0
  %v500 = vadd.f32 %v404, %v499
  %v501 = vand.u32 %v174, 4294901760
  %v502 = vsub.f32 %v174, %v501
  %503 = vmatmul.f32.gmra.mxu0 %v502
  %v504 = vpop.f32.mrf.mxu0
  %v505 = vadd.f32 %v408, %v504
  %v506 = vand.u32 %v177, 4294901760
  %v507 = vsub.f32 %v177, %v506
  %508 = vmatmul.f32.gmra.mxu0 %v507
  %v509 = vpop.f32.mrf.mxu0
  %v510 = vadd.f32 %v412, %v509
  %v511 = vand.u32 %v180, 4294901760
  %v512 = vsub.f32 %v180, %v511
  %513 = vmatmul.f32.gmra.mxu0 %v512
  %v514 = vpop.f32.mrf.mxu0
  %v515 = vadd.f32 %v416, %v514
  %516 = vdwg.mxu0
  %517 = vmatpush.msra.mxu0 0.0
  %518 = vmatpush.msra.mxu0 0.0
  %519 = vmatpush.msra.mxu0 0.0
  %520 = vmatpush.msra.mxu0 0.0
  %521 = vmatpush.msra.mxu0 0.0
  %522 = vmatpush.msra.mxu0 0.0
  %523 = vmatpush.msra.mxu0 0.0
  %524 = vmatpush.msra.mxu0 0.0
  %525 = vmatpush.msra.mxu0 0.0
  %526 = vmatpush.msra.mxu0 0.0
  %527 = vmatpush.msra.mxu0 0.0
  %528 = vmatpush.msra.mxu0 0.0
  %529 = vmatpush.msra.mxu0 0.0
  %530 = vmatpush.msra.mxu0 0.0
  %531 = vmatpush.msra.mxu0 0.0
  %v532 = vand.u32 %v184, 4294901760
  %533 = vmatpush.msra.mxu0 %v532
  %v534 = vand.u32 %v135, 4294901760
  %v535 = vsub.f32 %v135, %v534
  %v536 = vand.u32 %v535, 4294901760
  %537 = vmatmul.f32.gmra.mxu0 %v536
  %v538 = vpop.f32.mrf.mxu0
  %v539 = vadd.f32 %v440, %v538
  %v540 = vand.u32 %v138, 4294901760
  %v541 = vsub.f32 %v138, %v540
  %v542 = vand.u32 %v541, 4294901760
  %543 = vmatmul.f32.gmra.mxu0 %v542
  %v544 = vpop.f32.mrf.mxu0
  %v545 = vadd.f32 %v445, %v544
  %v546 = vand.u32 %v141, 4294901760
  %v547 = vsub.f32 %v141, %v546
  %v548 = vand.u32 %v547, 4294901760
  %549 = vmatmul.f32.gmra.mxu0 %v548
  %v550 = vpop.f32.mrf.mxu0
  %v551 = vadd.f32 %v450, %v550
  %v552 = vand.u32 %v144, 4294901760
  %v553 = vsub.f32 %v144, %v552
  %v554 = vand.u32 %v553, 4294901760
  %555 = vmatmul.f32.gmra.mxu0 %v554
  %v556 = vpop.f32.mrf.mxu0
  %v557 = vadd.f32 %v455, %v556
  %v558 = vand.u32 %v147, 4294901760
  %v559 = vsub.f32 %v147, %v558
  %v560 = vand.u32 %v559, 4294901760
  %561 = vmatmul.f32.gmra.mxu0 %v560
  %v562 = vpop.f32.mrf.mxu0
  %v563 = vadd.f32 %v460, %v562
  %v564 = vand.u32 %v150, 4294901760
  %v565 = vsub.f32 %v150, %v564
  %v566 = vand.u32 %v565, 4294901760
  %567 = vmatmul.f32.gmra.mxu0 %v566
  %v568 = vpop.f32.mrf.mxu0
  %v569 = vadd.f32 %v465, %v568
  %v570 = vand.u32 %v153, 4294901760
  %v571 = vsub.f32 %v153, %v570
  %v572 = vand.u32 %v571, 4294901760
  %573 = vmatmul.f32.gmra.mxu0 %v572
  %v574 = vpop.f32.mrf.mxu0
  %v575 = vadd.f32 %v470, %v574
  %v576 = vand.u32 %v156, 4294901760
  %v577 = vsub.f32 %v156, %v576
  %v578 = vand.u32 %v577, 4294901760
  %579 = vmatmul.f32.gmra.mxu0 %v578
  %v580 = vpop.f32.mrf.mxu0
  %v581 = vadd.f32 %v475, %v580
  %v582 = vand.u32 %v159, 4294901760
  %v583 = vsub.f32 %v159, %v582
  %v584 = vand.u32 %v583, 4294901760
  %585 = vmatmul.f32.gmra.mxu0 %v584
  %v586 = vpop.f32.mrf.mxu0
  %v587 = vadd.f32 %v480, %v586
  %v588 = vand.u32 %v162, 4294901760
  %v589 = vsub.f32 %v162, %v588
  %v590 = vand.u32 %v589, 4294901760
  %591 = vmatmul.f32.gmra.mxu0 %v590
  %v592 = vpop.f32.mrf.mxu0
  %v593 = vadd.f32 %v485, %v592
  %v594 = vand.u32 %v165, 4294901760
  %v595 = vsub.f32 %v165, %v594
  %v596 = vand.u32 %v595, 4294901760
  %597 = vmatmul.f32.gmra.mxu0 %v596
  %v598 = vpop.f32.mrf.mxu0
  %v599 = vadd.f32 %v490, %v598
  %v600 = vand.u32 %v168, 4294901760
  %v601 = vsub.f32 %v168, %v600
  %v602 = vand.u32 %v601, 4294901760
  %603 = vmatmul.f32.gmra.mxu0 %v602
  %v604 = vpop.f32.mrf.mxu0
  %v605 = vadd.f32 %v495, %v604
  %v606 = vand.u32 %v171, 4294901760
  %v607 = vsub.f32 %v171, %v606
  %v608 = vand.u32 %v607, 4294901760
  %609 = vmatmul.f32.gmra.mxu0 %v608
  %v610 = vpop.f32.mrf.mxu0
  %v611 = vadd.f32 %v500, %v610
  %v612 = vand.u32 %v174, 4294901760
  %v613 = vsub.f32 %v174, %v612
  %v614 = vand.u32 %v613, 4294901760
  %615 = vmatmul.f32.gmra.mxu0 %v614
  %v616 = vpop.f32.mrf.mxu0
  %v617 = vadd.f32 %v505, %v616
  %v618 = vand.u32 %v177, 4294901760
  %v619 = vsub.f32 %v177, %v618
  %v620 = vand.u32 %v619, 4294901760
  %621 = vmatmul.f32.gmra.mxu0 %v620
  %v622 = vpop.f32.mrf.mxu0
  %v623 = vadd.f32 %v510, %v622
  %v624 = vand.u32 %v180, 4294901760
  %v625 = vsub.f32 %v180, %v624
  %v626 = vand.u32 %v625, 4294901760
  %627 = vmatmul.f32.gmra.mxu0 %v626
  %v628 = vpop.f32.mrf.mxu0
  %v629 = vadd.f32 %v515, %v628
  %630 = vdwg.mxu0
  %631 = vmatpush.msra.mxu0 0.0
  %632 = vmatpush.msra.mxu0 0.0
  %633 = vmatpush.msra.mxu0 0.0
  %634 = vmatpush.msra.mxu0 0.0
  %635 = vmatpush.msra.mxu0 0.0
  %636 = vmatpush.msra.mxu0 0.0
  %637 = vmatpush.msra.mxu0 0.0
  %638 = vmatpush.msra.mxu0 0.0
  %639 = vmatpush.msra.mxu0 0.0
  %640 = vmatpush.msra.mxu0 0.0
  %641 = vmatpush.msra.mxu0 0.0
  %642 = vmatpush.msra.mxu0 0.0
  %643 = vmatpush.msra.mxu0 0.0
  %644 = vmatpush.msra.mxu0 0.0
  %645 = vmatpush.msra.mxu0 0.0
  %v646 = vand.u32 %v184, 4294901760
  %v647 = vsub.f32 %v184, %v646
  %v648 = vand.u32 %v647, 4294901760
  %649 = vmatpush.msra.mxu0 %v648
  %v650 = vand.u32 %v135, 4294901760
  %651 = vmatmul.f32.gmra.mxu0 %v650
  %v652 = vpop.f32.mrf.mxu0
  %v653 = vadd.f32 %v539, %v652
  %v654 = vand.u32 %v138, 4294901760
  %655 = vmatmul.f32.gmra.mxu0 %v654
  %v656 = vpop.f32.mrf.mxu0
  %v657 = vadd.f32 %v545, %v656
  %v658 = vand.u32 %v141, 4294901760
  %659 = vmatmul.f32.gmra.mxu0 %v658
  %v660 = vpop.f32.mrf.mxu0
  %v661 = vadd.f32 %v551, %v660
  %v662 = vand.u32 %v144, 4294901760
  %663 = vmatmul.f32.gmra.mxu0 %v662
  %v664 = vpop.f32.mrf.mxu0
  %v665 = vadd.f32 %v557, %v664
  %v666 = vand.u32 %v147, 4294901760
  %667 = vmatmul.f32.gmra.mxu0 %v666
  %v668 = vpop.f32.mrf.mxu0
  %v669 = vadd.f32 %v563, %v668
  %v670 = vand.u32 %v150, 4294901760
  %671 = vmatmul.f32.gmra.mxu0 %v670
  %v672 = vpop.f32.mrf.mxu0
  %v673 = vadd.f32 %v569, %v672
  %v674 = vand.u32 %v153, 4294901760
  %675 = vmatmul.f32.gmra.mxu0 %v674
  %v676 = vpop.f32.mrf.mxu0
  %v677 = vadd.f32 %v575, %v676
  %v678 = vand.u32 %v156, 4294901760
  %679 = vmatmul.f32.gmra.mxu0 %v678
  %v680 = vpop.f32.mrf.mxu0
  %v681 = vadd.f32 %v581, %v680
  %v682 = vand.u32 %v159, 4294901760
  %683 = vmatmul.f32.gmra.mxu0 %v682
  %v684 = vpop.f32.mrf.mxu0
  %v685 = vadd.f32 %v587, %v684
  %v686 = vand.u32 %v162, 4294901760
  %687 = vmatmul.f32.gmra.mxu0 %v686
  %v688 = vpop.f32.mrf.mxu0
  %v689 = vadd.f32 %v593, %v688
  %v690 = vand.u32 %v165, 4294901760
  %691 = vmatmul.f32.gmra.mxu0 %v690
  %v692 = vpop.f32.mrf.mxu0
  %v693 = vadd.f32 %v599, %v692
  %v694 = vand.u32 %v168, 4294901760
  %695 = vmatmul.f32.gmra.mxu0 %v694
  %v696 = vpop.f32.mrf.mxu0
  %v697 = vadd.f32 %v605, %v696
  %v698 = vand.u32 %v171, 4294901760
  %699 = vmatmul.f32.gmra.mxu0 %v698
  %v700 = vpop.f32.mrf.mxu0
  %v701 = vadd.f32 %v611, %v700
  %v702 = vand.u32 %v174, 4294901760
  %703 = vmatmul.f32.gmra.mxu0 %v702
  %v704 = vpop.f32.mrf.mxu0
  %v705 = vadd.f32 %v617, %v704
  %v706 = vand.u32 %v177, 4294901760
  %707 = vmatmul.f32.gmra.mxu0 %v706
  %v708 = vpop.f32.mrf.mxu0
  %v709 = vadd.f32 %v623, %v708
  %v710 = vand.u32 %v180, 4294901760
  %711 = vmatmul.f32.gmra.mxu0 %v710
  %v712 = vpop.f32.mrf.mxu0
  %v713 = vadd.f32 %v629, %v712
  %714 = vdwg.mxu0
  %715 = vmatpush.msra.mxu0 0.0
  %716 = vmatpush.msra.mxu0 0.0
  %717 = vmatpush.msra.mxu0 0.0
  %718 = vmatpush.msra.mxu0 0.0
  %719 = vmatpush.msra.mxu0 0.0
  %720 = vmatpush.msra.mxu0 0.0
  %721 = vmatpush.msra.mxu0 0.0
  %722 = vmatpush.msra.mxu0 0.0
  %723 = vmatpush.msra.mxu0 0.0
  %724 = vmatpush.msra.mxu0 0.0
  %725 = vmatpush.msra.mxu0 0.0
  %726 = vmatpush.msra.mxu0 0.0
  %727 = vmatpush.msra.mxu0 0.0
  %728 = vmatpush.msra.mxu0 0.0
  %729 = vmatpush.msra.mxu0 0.0
  %v730 = vand.u32 %v184, 4294901760
  %731 = vmatpush.msra.mxu0 %v730
  %v732 = vand.u32 %v135, 4294901760
  %733 = vmatmul.f32.gmra.mxu0 %v732
  %v734 = vpop.f32.mrf.mxu0
  %v735 = vadd.f32 %v653, %v734
  %v736 = vand.u32 %v138, 4294901760
  %737 = vmatmul.f32.gmra.mxu0 %v736
  %v738 = vpop.f32.mrf.mxu0
  %v739 = vadd.f32 %v657, %v738
  %v740 = vand.u32 %v141, 4294901760
  %741 = vmatmul.f32.gmra.mxu0 %v740
  %v742 = vpop.f32.mrf.mxu0
  %v743 = vadd.f32 %v661, %v742
  %v744 = vand.u32 %v144, 4294901760
  %745 = vmatmul.f32.gmra.mxu0 %v744
  %v746 = vpop.f32.mrf.mxu0
  %v747 = vadd.f32 %v665, %v746
  %v748 = vand.u32 %v147, 4294901760
  %749 = vmatmul.f32.gmra.mxu0 %v748
  %v750 = vpop.f32.mrf.mxu0
  %v751 = vadd.f32 %v669, %v750
  %v752 = vand.u32 %v150, 4294901760
  %753 = vmatmul.f32.gmra.mxu0 %v752
  %v754 = vpop.f32.mrf.mxu0
  %v755 = vadd.f32 %v673, %v754
  %v756 = vand.u32 %v153, 4294901760
  %757 = vmatmul.f32.gmra.mxu0 %v756
  %v758 = vpop.f32.mrf.mxu0
  %v759 = vadd.f32 %v677, %v758
  %v760 = vand.u32 %v156, 4294901760
  %761 = vmatmul.f32.gmra.mxu0 %v760
  %v762 = vpop.f32.mrf.mxu0
  %v763 = vadd.f32 %v681, %v762
  %v764 = vand.u32 %v159, 4294901760
  %765 = vmatmul.f32.gmra.mxu0 %v764
  %v766 = vpop.f32.mrf.mxu0
  %v767 = vadd.f32 %v685, %v766
  %v768 = vand.u32 %v162, 4294901760
  %769 = vmatmul.f32.gmra.mxu0 %v768
  %v770 = vpop.f32.mrf.mxu0
  %v771 = vadd.f32 %v689, %v770
  %v772 = vand.u32 %v165, 4294901760
  %773 = vmatmul.f32.gmra.mxu0 %v772
  %v774 = vpop.f32.mrf.mxu0
  %v775 = vadd.f32 %v693, %v774
  %v776 = vand.u32 %v168, 4294901760
  %777 = vmatmul.f32.gmra.mxu0 %v776
  %v778 = vpop.f32.mrf.mxu0
  %v779 = vadd.f32 %v697, %v778
  %v780 = vand.u32 %v171, 4294901760
  %781 = vmatmul.f32.gmra.mxu0 %v780
  %v782 = vpop.f32.mrf.mxu0
  %v783 = vadd.f32 %v701, %v782
  %v784 = vand.u32 %v174, 4294901760
  %785 = vmatmul.f32.gmra.mxu0 %v784
  %v786 = vpop.f32.mrf.mxu0
  %v787 = vadd.f32 %v705, %v786
  %v788 = vand.u32 %v177, 4294901760
  %789 = vmatmul.f32.gmra.mxu0 %v788
  %v790 = vpop.f32.mrf.mxu0
  %v791 = vadd.f32 %v709, %v790
  %v792 = vand.u32 %v180, 4294901760
  %793 = vmatmul.f32.gmra.mxu0 %v792
  %v794 = vpop.f32.mrf.mxu0
  %v795 = vadd.f32 %v713, %v794
  %796 = vdwg.mxu0
  %v797 = vmax.f32 %v735, 0.0
  %v798 = vmax.f32 %v739, 0.0
  %v799 = vmax.f32 %v743, 0.0
  %v800 = vmax.f32 %v747, 0.0
  %v801 = vmax.f32 %v751, 0.0
  %v802 = vmax.f32 %v755, 0.0
  %v803 = vmax.f32 %v759, 0.0
  %v804 = vmax.f32 %v763, 0.0
  %v805 = vmax.f32 %v767, 0.0
  %v806 = vmax.f32 %v771, 0.0
  %v807 = vmax.f32 %v775, 0.0
  %v808 = vmax.f32 %v779, 0.0
  %v809 = vmax.f32 %v783, 0.0
  %v810 = vmax.f32 %v787, 0.0
  %v811 = vmax.f32 %v791, 0.0
  %v812 = vmax.f32 %v795, 0.0
  %v813 = vld [vmem:[%s3] sm:$0xf]
  %v814 = vld [vmem:[%s4] sm:$0xf]
  %816 = vset.pattern.permute.xlu0 0
  %817 = vperm.xlu0 %816, %v814
  %v818 = vpop.permute.xlu0 %817
  %v820 = vand.u32 %v812, 4294901760
  %821 = vmatpush.msra.mxu0 %v820
  %v822 = vand.u32 %v811, 4294901760
  %823 = vmatpush.msra.mxu0 %v822
  %v824 = vand.u32 %v810, 4294901760
  %825 = vmatpush.msra.mxu0 %v824
  %v826 = vand.u32 %v809, 4294901760
  %827 = vmatpush.msra.mxu0 %v826
  %v828 = vand.u32 %v808, 4294901760
  %829 = vmatpush.msra.mxu0 %v828
  %v830 = vand.u32 %v807, 4294901760
  %831 = vmatpush.msra.mxu0 %v830
  %v832 = vand.u32 %v806, 4294901760
  %833 = vmatpush.msra.mxu0 %v832
  %v834 = vand.u32 %v805, 4294901760
  %835 = vmatpush.msra.mxu0 %v834
  %v836 = vand.u32 %v804, 4294901760
  %837 = vmatpush.msra.mxu0 %v836
  %v838 = vand.u32 %v803, 4294901760
  %839 = vmatpush.msra.mxu0 %v838
  %v840 = vand.u32 %v802, 4294901760
  %841 = vmatpush.msra.mxu0 %v840
  %v842 = vand.u32 %v801, 4294901760
  %843 = vmatpush.msra.mxu0 %v842
  %v844 = vand.u32 %v800, 4294901760
  %845 = vmatpush.msra.mxu0 %v844
  %v846 = vand.u32 %v799, 4294901760
  %847 = vmatpush.msra.mxu0 %v846
  %v848 = vand.u32 %v798, 4294901760
  %849 = vmatpush.msra.mxu0 %v848
  %v850 = vand.u32 %v797, 4294901760
  %851 = vmatpush.msra.mxu0 %v850
  %v852 = vand.u32 %v813, 4294901760
  %v853 = vsub.f32 %v813, %v852
  %v854 = vand.u32 %v853, 4294901760
  %v855 = vsub.f32 %v853, %v854
  %v856 = vand.u32 %v855, 4294901760
  %857 = vmatmul.f32.gmra.mxu0 %v856
  %v858 = vpop.f32.mrf.mxu0
  %v859 = vadd.f32 %v818, %v858
  %860 = vdwg.mxu0
  %v861 = vand.u32 %v812, 4294901760
  %v862 = vsub.f32 %v812, %v861
  %v863 = vand.u32 %v862, 4294901760
  %v864 = vsub.f32 %v862, %v863
  %v865 = vand.u32 %v864, 4294901760
  %866 = vmatpush.msra.mxu0 %v865
  %v867 = vand.u32 %v811, 4294901760
  %v868 = vsub.f32 %v811, %v867
  %v869 = vand.u32 %v868, 4294901760
  %v870 = vsub.f32 %v868, %v869
  %v871 = vand.u32 %v870, 4294901760
  %872 = vmatpush.msra.mxu0 %v871
  %v873 = vand.u32 %v810, 4294901760
  %v874 = vsub.f32 %v810, %v873
  %v875 = vand.u32 %v874, 4294901760
  %v876 = vsub.f32 %v874, %v875
  %v877 = vand.u32 %v876, 4294901760
  %878 = vmatpush.msra.mxu0 %v877
  %v879 = vand.u32 %v809, 4294901760
  %v880 = vsub.f32 %v809, %v879
  %v881 = vand.u32 %v880, 4294901760
  %v882 = vsub.f32 %v880, %v881
  %v883 = vand.u32 %v882, 4294901760
  %884 = vmatpush.msra.mxu0 %v883
  %v885 = vand.u32 %v808, 4294901760
  %v886 = vsub.f32 %v808, %v885
  %v887 = vand.u32 %v886, 4294901760
  %v888 = vsub.f32 %v886, %v887
  %v889 = vand.u32 %v888, 4294901760
  %890 = vmatpush.msra.mxu0 %v889
  %v891 = vand.u32 %v807, 4294901760
  %v892 = vsub.f32 %v807, %v891
  %v893 = vand.u32 %v892, 4294901760
  %v894 = vsub.f32 %v892, %v893
  %v895 = vand.u32 %v894, 4294901760
  %896 = vmatpush.msra.mxu0 %v895
  %v897 = vand.u32 %v806, 4294901760
  %v898 = vsub.f32 %v806, %v897
  %v899 = vand.u32 %v898, 4294901760
  %v900 = vsub.f32 %v898, %v899
  %v901 = vand.u32 %v900, 4294901760
  %902 = vmatpush.msra.mxu0 %v901
  %v903 = vand.u32 %v805, 4294901760
  %v904 = vsub.f32 %v805, %v903
  %v905 = vand.u32 %v904, 4294901760
  %v906 = vsub.f32 %v904, %v905
  %v907 = vand.u32 %v906, 4294901760
  %908 = vmatpush.msra.mxu0 %v907
  %v909 = vand.u32 %v804, 4294901760
  %v910 = vsub.f32 %v804, %v909
  %v911 = vand.u32 %v910, 4294901760
  %v912 = vsub.f32 %v910, %v911
  %v913 = vand.u32 %v912, 4294901760
  %914 = vmatpush.msra.mxu0 %v913
  %v915 = vand.u32 %v803, 4294901760
  %v916 = vsub.f32 %v803, %v915
  %v917 = vand.u32 %v916, 4294901760
  %v918 = vsub.f32 %v916, %v917
  %v919 = vand.u32 %v918, 4294901760
  %920 = vmatpush.msra.mxu0 %v919
  %v921 = vand.u32 %v802, 4294901760
  %v922 = vsub.f32 %v802, %v921
  %v923 = vand.u32 %v922, 4294901760
  %v924 = vsub.f32 %v922, %v923
  %v925 = vand.u32 %v924, 4294901760
  %926 = vmatpush.msra.mxu0 %v925
  %v927 = vand.u32 %v801, 4294901760
  %v928 = vsub.f32 %v801, %v927
  %v929 = vand.u32 %v928, 4294901760
  %v930 = vsub.f32 %v928, %v929
  %v931 = vand.u32 %v930, 4294901760
  %932 = vmatpush.msra.mxu0 %v931
  %v933 = vand.u32 %v800, 4294901760
  %v934 = vsub.f32 %v800, %v933
  %v935 = vand.u32 %v934, 4294901760
  %v936 = vsub.f32 %v934, %v935
  %v937 = vand.u32 %v936, 4294901760
  %938 = vmatpush.msra.mxu0 %v937
  %v939 = vand.u32 %v799, 4294901760
  %v940 = vsub.f32 %v799, %v939
  %v941 = vand.u32 %v940, 4294901760
  %v942 = vsub.f32 %v940, %v941
  %v943 = vand.u32 %v942, 4294901760
  %944 = vmatpush.msra.mxu0 %v943
  %v945 = vand.u32 %v798, 4294901760
  %v946 = vsub.f32 %v798, %v945
  %v947 = vand.u32 %v946, 4294901760
  %v948 = vsub.f32 %v946, %v947
  %v949 = vand.u32 %v948, 4294901760
  %950 = vmatpush.msra.mxu0 %v949
  %v951 = vand.u32 %v797, 4294901760
  %v952 = vsub.f32 %v797, %v951
  %v953 = vand.u32 %v952, 4294901760
  %v954 = vsub.f32 %v952, %v953
  %v955 = vand.u32 %v954, 4294901760
  %956 = vmatpush.msra.mxu0 %v955
  %v957 = vand.u32 %v813, 4294901760
  %958 = vmatmul.f32.gmra.mxu0 %v957
  %v959 = vpop.f32.mrf.mxu0
  %v960 = vadd.f32 %v859, %v959
  %961 = vdwg.mxu0
  %v962 = vand.u32 %v812, 4294901760
  %v963 = vsub.f32 %v812, %v962
  %964 = vmatpush.msra.mxu0 %v963
  %v965 = vand.u32 %v811, 4294901760
  %v966 = vsub.f32 %v811, %v965
  %967 = vmatpush.msra.mxu0 %v966
  %v968 = vand.u32 %v810, 4294901760
  %v969 = vsub.f32 %v810, %v968
  %970 = vmatpush.msra.mxu0 %v969
  %v971 = vand.u32 %v809, 4294901760
  %v972 = vsub.f32 %v809, %v971
  %973 = vmatpush.msra.mxu0 %v972
  %v974 = vand.u32 %v808, 4294901760
  %v975 = vsub.f32 %v808, %v974
  %976 = vmatpush.msra.mxu0 %v975
  %v977 = vand.u32 %v807, 4294901760
  %v978 = vsub.f32 %v807, %v977
  %979 = vmatpush.msra.mxu0 %v978
  %v980 = vand.u32 %v806, 4294901760
  %v981 = vsub.f32 %v806, %v980
  %982 = vmatpush.msra.mxu0 %v981
  %v983 = vand.u32 %v805, 4294901760
  %v984 = vsub.f32 %v805, %v983
  %985 = vmatpush.msra.mxu0 %v984
  %v986 = vand.u32 %v804, 4294901760
  %v987 = vsub.f32 %v804, %v986
  %988 = vmatpush.msra.mxu0 %v987
  %v989 = vand.u32 %v803, 4294901760
  %v990 = vsub.f32 %v803, %v989
  %991 = vmatpush.msra.mxu0 %v990
  %v992 = vand.u32 %v802, 4294901760
  %v993 = vsub.f32 %v802, %v992
  %994 = vmatpush.msra.mxu0 %v993
  %v995 = vand.u32 %v801, 4294901760
  %v996 = vsub.f32 %v801, %v995
  %997 = vmatpush.msra.mxu0 %v996
  %v998 = vand.u32 %v800, 4294901760
  %v999 = vsub.f32 %v800, %v998
  %1000 = vmatpush.msra.mxu0 %v999
  %v1001 = vand.u32 %v799, 4294901760
  %v1002 = vsub.f32 %v799, %v1001
  %1003 = vmatpush.msra.mxu0 %v1002
  %v1004 = vand.u32 %v798, 4294901760
  %v1005 = vsub.f32 %v798, %v1004
  %1006 = vmatpush.msra.mxu0 %v1005
  %v1007 = vand.u32 %v797, 4294901760
  %v1008 = vsub.f32 %v797, %v1007
  %1009 = vmatpush.msra.mxu0 %v1008
  %v1010 = vand.u32 %v813, 4294901760
  %v1011 = vsub.f32 %v813, %v1010
  %1012 = vmatmul.f32.gmra.mxu0 %v1011
  %v1013 = vpop.f32.mrf.mxu0
  %v1014 = vadd.f32 %v960, %v1013
  %1015 = vdwg.mxu0
  %v1016 = vand.u32 %v812, 4294901760
  %1017 = vmatpush.msra.mxu0 %v1016
  %v1018 = vand.u32 %v811, 4294901760
  %1019 = vmatpush.msra.mxu0 %v1018
  %v1020 = vand.u32 %v810, 4294901760
  %1021 = vmatpush.msra.mxu0 %v1020
  %v1022 = vand.u32 %v809, 4294901760
  %1023 = vmatpush.msra.mxu0 %v1022
  %v1024 = vand.u32 %v808, 4294901760
  %1025 = vmatpush.msra.mxu0 %v1024
  %v1026 = vand.u32 %v807, 4294901760
  %1027 = vmatpush.msra.mxu0 %v1026
  %v1028 = vand.u32 %v806, 4294901760
  %1029 = vmatpush.msra.mxu0 %v1028
  %v1030 = vand.u32 %v805, 4294901760
  %1031 = vmatpush.msra.mxu0 %v1030
  %v1032 = vand.u32 %v804, 4294901760
  %1033 = vmatpush.msra.mxu0 %v1032
  %v1034 = vand.u32 %v803, 4294901760
  %1035 = vmatpush.msra.mxu0 %v1034
  %v1036 = vand.u32 %v802, 4294901760
  %1037 = vmatpush.msra.mxu0 %v1036
  %v1038 = vand.u32 %v801, 4294901760
  %1039 = vmatpush.msra.mxu0 %v1038
  %v1040 = vand.u32 %v800, 4294901760
  %1041 = vmatpush.msra.mxu0 %v1040
  %v1042 = vand.u32 %v799, 4294901760
  %1043 = vmatpush.msra.mxu0 %v1042
  %v1044 = vand.u32 %v798, 4294901760
  %1045 = vmatpush.msra.mxu0 %v1044
  %v1046 = vand.u32 %v797, 4294901760
  %1047 = vmatpush.msra.mxu0 %v1046
  %v1048 = vand.u32 %v813, 4294901760
  %v1049 = vsub.f32 %v813, %v1048
  %v1050 = vand.u32 %v1049, 4294901760
  %1051 = vmatmul.f32.gmra.mxu0 %v1050
  %v1052 = vpop.f32.mrf.mxu0
  %v1053 = vadd.f32 %v1014, %v1052
  %1054 = vdwg.mxu0
  %v1055 = vand.u32 %v812, 4294901760
  %v1056 = vsub.f32 %v812, %v1055
  %v1057 = vand.u32 %v1056, 4294901760
  %1058 = vmatpush.msra.mxu0 %v1057
  %v1059 = vand.u32 %v811, 4294901760
  %v1060 = vsub.f32 %v811, %v1059
  %v1061 = vand.u32 %v1060, 4294901760
  %1062 = vmatpush.msra.mxu0 %v1061
  %v1063 = vand.u32 %v810, 4294901760
  %v1064 = vsub.f32 %v810, %v1063
  %v1065 = vand.u32 %v1064, 4294901760
  %1066 = vmatpush.msra.mxu0 %v1065
  %v1067 = vand.u32 %v809, 4294901760
  %v1068 = vsub.f32 %v809, %v1067
  %v1069 = vand.u32 %v1068, 4294901760
  %1070 = vmatpush.msra.mxu0 %v1069
  %v1071 = vand.u32 %v808, 4294901760
  %v1072 = vsub.f32 %v808, %v1071
  %v1073 = vand.u32 %v1072, 4294901760
  %1074 = vmatpush.msra.mxu0 %v1073
  %v1075 = vand.u32 %v807, 4294901760
  %v1076 = vsub.f32 %v807, %v1075
  %v1077 = vand.u32 %v1076, 4294901760
  %1078 = vmatpush.msra.mxu0 %v1077
  %v1079 = vand.u32 %v806, 4294901760
  %v1080 = vsub.f32 %v806, %v1079
  %v1081 = vand.u32 %v1080, 4294901760
  %1082 = vmatpush.msra.mxu0 %v1081
  %v1083 = vand.u32 %v805, 4294901760
  %v1084 = vsub.f32 %v805, %v1083
  %v1085 = vand.u32 %v1084, 4294901760
  %1086 = vmatpush.msra.mxu0 %v1085
  %v1087 = vand.u32 %v804, 4294901760
  %v1088 = vsub.f32 %v804, %v1087
  %v1089 = vand.u32 %v1088, 4294901760
  %1090 = vmatpush.msra.mxu0 %v1089
  %v1091 = vand.u32 %v803, 4294901760
  %v1092 = vsub.f32 %v803, %v1091
  %v1093 = vand.u32 %v1092, 4294901760
  %1094 = vmatpush.msra.mxu0 %v1093
  %v1095 = vand.u32 %v802, 4294901760
  %v1096 = vsub.f32 %v802, %v1095
  %v1097 = vand.u32 %v1096, 4294901760
  %1098 = vmatpush.msra.mxu0 %v1097
  %v1099 = vand.u32 %v801, 4294901760
  %v1100 = vsub.f32 %v801, %v1099
  %v1101 = vand.u32 %v1100, 4294901760
  %1102 = vmatpush.msra.mxu0 %v1101
  %v1103 = vand.u32 %v800, 4294901760
  %v1104 = vsub.f32 %v800, %v1103
  %v1105 = vand.u32 %v1104, 4294901760
  %1106 = vmatpush.msra.mxu0 %v1105
  %v1107 = vand.u32 %v799, 4294901760
  %v1108 = vsub.f32 %v799, %v1107
  %v1109 = vand.u32 %v1108, 4294901760
  %1110 = vmatpush.msra.mxu0 %v1109
  %v1111 = vand.u32 %v798, 4294901760
  %v1112 = vsub.f32 %v798, %v1111
  %v1113 = vand.u32 %v1112, 4294901760
  %1114 = vmatpush.msra.mxu0 %v1113
  %v1115 = vand.u32 %v797, 4294901760
  %v1116 = vsub.f32 %v797, %v1115
  %v1117 = vand.u32 %v1116, 4294901760
  %1118 = vmatpush.msra.mxu0 %v1117
  %v1119 = vand.u32 %v813, 4294901760
  %1120 = vmatmul.f32.gmra.mxu0 %v1119
  %v1121 = vpop.f32.mrf.mxu0
  %v1122 = vadd.f32 %v1053, %v1121
  %1123 = vdwg.mxu0
  %v1124 = vand.u32 %v812, 4294901760
  %1125 = vmatpush.msra.mxu0 %v1124
  %v1126 = vand.u32 %v811, 4294901760
  %1127 = vmatpush.msra.mxu0 %v1126
  %v1128 = vand.u32 %v810, 4294901760
  %1129 = vmatpush.msra.mxu0 %v1128
  %v1130 = vand.u32 %v809, 4294901760
  %1131 = vmatpush.msra.mxu0 %v1130
  %v1132 = vand.u32 %v808, 4294901760
  %1133 = vmatpush.msra.mxu0 %v1132
  %v1134 = vand.u32 %v807, 4294901760
  %1135 = vmatpush.msra.mxu0 %v1134
  %v1136 = vand.u32 %v806, 4294901760
  %1137 = vmatpush.msra.mxu0 %v1136
  %v1138 = vand.u32 %v805, 4294901760
  %1139 = vmatpush.msra.mxu0 %v1138
  %v1140 = vand.u32 %v804, 4294901760
  %1141 = vmatpush.msra.mxu0 %v1140
  %v1142 = vand.u32 %v803, 4294901760
  %1143 = vmatpush.msra.mxu0 %v1142
  %v1144 = vand.u32 %v802, 4294901760
  %1145 = vmatpush.msra.mxu0 %v1144
  %v1146 = vand.u32 %v801, 4294901760
  %1147 = vmatpush.msra.mxu0 %v1146
  %v1148 = vand.u32 %v800, 4294901760
  %1149 = vmatpush.msra.mxu0 %v1148
  %v1150 = vand.u32 %v799, 4294901760
  %1151 = vmatpush.msra.mxu0 %v1150
  %v1152 = vand.u32 %v798, 4294901760
  %1153 = vmatpush.msra.mxu0 %v1152
  %v1154 = vand.u32 %v797, 4294901760
  %1155 = vmatpush.msra.mxu0 %v1154
  %v1156 = vand.u32 %v813, 4294901760
  %1157 = vmatmul.f32.gmra.mxu0 %v1156
  %v1158 = vpop.f32.mrf.mxu0
  %v1159 = vadd.f32 %v1122, %v1158
  %1160 = vdwg.mxu0
  %1161 = vst [vmem:[%s5] sm:$0xf] %v1159
  // Predicated region
  $region22: #{nn_forward.1} parent=0 // pred_check
    _
  $region23: #{nn_forward.1} parent=0 // pred_check_branch
    %1163 = sbr.rel (0) target = $region25
  $region24: #{nn_forward.1} parent=0 // pred_region
    _
  $region25: #{nn_forward.1} parent=0 // pred_fallthru
    _
  // Predicated region
  $region26: #{nn_forward.1} parent=0 // pred_check
    _
  $region27: #{nn_forward.1} parent=0 // pred_check_branch
    %1165 = sbr.rel (0) target = $region29
  $region28: #{nn_forward.1} parent=0 // pred_region
    _
  $region29: #{nn_forward.1} parent=0 // pred_fallthru
    _

</llo_original>
